<compile_context>
chip_gen: v7x
topology: tpu7x:2x2x1
jax: 0.10.0
libtpu: 0.0.40
codegen_flags: <defaults>
</compile_context>

<pallas_src>
import jax
import jax.numpy as jnp
from jax.experimental import pallas as pl
from jax.experimental.pallas import tpu as pltpu

NEWS_DIM = 400          # fixed in the PyTorch module
ATT_HIDDEN = 128        # cfg.model.attention_hidden_dim
NUM_VIEWS = 5           # title, graph, entity, abs_entity, subcategory


def _round_up(x, m):
    return ((x + m - 1) // m) * m


def _click_encoder_kernel(title_ref, graph_ref, ent_ref, abs_ref, sub_ref,
                          w1_ref, b1_ref, w2_ref, b2_ref, o_ref):
    # view refs : (tm, D) each
    # w1_ref    : (D, H)    b1_ref: (1, H)
    # w2_ref    : (1, H)    (row form of the (H, 1) weight)
    # b2_ref    : (1, 1)    scalar in SMEM
    # o_ref     : (tm, D)
    w1 = w1_ref[...]                      # (D, H) f32, hoisted
    b1 = b1_ref[...]                      # (1, H)
    w2_row = w2_ref[...]                  # (1, H)
    b2 = b2_ref[0, 0]                     # scalar (SMEM)

    views = (title_ref, graph_ref, ent_ref, abs_ref, sub_ref)

    xs = []          # per-view (tm, D) f32 tiles
    exps = []        # per-view (tm, 1) exp(score) columns
    for ref in views:
        x = ref[...].astype(jnp.float32)                                   # (tm, D)
        # e = tanh(x @ W1 + b1)   -- MXU matmul, EUP tanh
        e = jnp.tanh(
            jnp.dot(x, w1, preferred_element_type=jnp.float32) + b1
        )                                                                  # (tm, H)
        # score = e @ w2 + b2  done as VPU multiply + lane (XLU) reduce:
        score = jnp.sum(e * w2_row, axis=-1, keepdims=True) + b2           # (tm, 1)
        xs.append(x)
        exps.append(jnp.exp(score))

    # alpha_s = exp(score_s) / (sum_s exp(score_s) + 1e-8)
    denom = exps[0] + exps[1] + exps[2] + exps[3] + exps[4] + jnp.float32(1e-8)
    inv = pl.reciprocal(denom, approx=False)                               # (tm, 1)

    # weighted sum over views: 5 lane-dense (tm, D) FMAs
    out = xs[0] * (exps[0] * inv)
    for s in range(1, NUM_VIEWS):
        out = out + xs[s] * (exps[s] * inv)
    o_ref[...] = out.astype(o_ref.dtype)


def click_encoder_forward(click_title_emb,
                          click_graph_emb,
                          click_entity_emb,
                          click_abs_entity_emb,
                          click_subcategory_emb,
                          params,
                          *,
                          tile_m=256):
    """All embedding inputs: (B, N, D). Returns (B, N, D)."""
    B, N, D = click_title_emb.shape
    M = B * N

    # Flatten (B, N, D) -> (M, D): free reshape on contiguous row-major data.
    views = [v.reshape(M, D) for v in (click_title_emb,
                                       click_graph_emb,
                                       click_entity_emb,
                                       click_abs_entity_emb,
                                       click_subcategory_emb)]

    w1 = params["w1"]                         # (D, H)
    b1 = params["b1"].reshape(1, -1)          # (1, H)
    w2_row = params["w2"].reshape(1, -1)      # (1, H)  (row form of (H, 1))
    b2 = params["b2"].reshape(1, 1)           # (1, 1)  -> SMEM scalar
    H = w1.shape[1]

    # Tile M. tile_m must be a multiple of 8 (sublane rule); partial tail
    # blocks are handled by Pallas (OOB reads padded, OOB writes masked).
    tile_m = max(8, min(tile_m, _round_up(M, 8)))
    tile_m = _round_up(tile_m, 8)
    grid = (pl.cdiv(M, tile_m),)

    in_itemsize = jnp.dtype(click_title_emb.dtype).itemsize
    cost = pl.CostEstimate(
        flops=2 * M * NUM_VIEWS * D * H + 4 * M * NUM_VIEWS * D,
        transcendentals=M * NUM_VIEWS * (H + 1),
        bytes_accessed=NUM_VIEWS * M * D * in_itemsize      # 5 view reads
                       + M * D * 4                           # output write
                       + (D * H + 2 * H + 1) * 4,            # weights
    )

    view_spec = pl.BlockSpec((tile_m, D), lambda i: (i, 0))

    out = pl.pallas_call(
        _click_encoder_kernel,
        out_shape=jax.ShapeDtypeStruct((M, D), jnp.float32),
        grid_spec=pltpu.PrefetchScalarGridSpec(
            num_scalar_prefetch=0,
            grid=grid,
            in_specs=[
                view_spec, view_spec, view_spec, view_spec, view_spec,
                pl.BlockSpec((D, H), lambda i: (0, 0)),
                pl.BlockSpec((1, H), lambda i: (0, 0)),
                pl.BlockSpec((1, H), lambda i: (0, 0)),
                pl.BlockSpec(memory_space=pltpu.MemorySpace.SMEM),
            ],
            out_specs=pl.BlockSpec((tile_m, D), lambda i: (i, 0)),
        ),
        compiler_params=pltpu.CompilerParams(
            dimension_semantics=("parallel",),
            vmem_limit_bytes=48 * 1024 * 1024,
        ),
        cost_estimate=cost,
    )(*views, w1, b1, w2_row, b2)

    return out.reshape(B, N, D)


def _reference(x_views, params):
    """Pure-JAX reference for correctness check (matches PyTorch module)."""
    x = jnp.stack(x_views, axis=-2)                       # (B, N, S, D)
    B, N, S, D = x.shape
    x = x.reshape(B * N, S, D)
    e = jnp.tanh(x @ params["w1"] + params["b1"])         # (M, S, H)
    score = (e @ params["w2"] + params["b2"])[..., 0]     # (M, S)
    alpha = jnp.exp(score)
    alpha = alpha / (jnp.sum(alpha, axis=-1, keepdims=True) + 1e-8)
    out = jnp.sum(alpha[..., None] * x, axis=1)           # (M, D)
    return out.reshape(B, N, D)


if __name__ == "__main__":
    key = jax.random.PRNGKey(0)
    B, N, D, H = 2, 8, NEWS_DIM, ATT_HIDDEN

    k_inputs, k_params = jax.random.split(key)
    ks = jax.random.split(k_inputs, NUM_VIEWS)
    title = jax.random.normal(ks[0], (B, N, D), dtype=jnp.float32)
    graph = jax.random.normal(ks[1], (B, N, D), dtype=jnp.float32)
    entity = jax.random.normal(ks[2], (B, N, D), dtype=jnp.float32)
    abs_entity = jax.random.normal(ks[3], (B, N, D), dtype=jnp.float32)
    subcat = jax.random.normal(ks[4], (B, N, D), dtype=jnp.float32)

    # Deterministic AttentionPooling parameters (nn.Linear-style uniform init).
    kp = jax.random.split(k_params, 4)
    lim1 = 1.0 / jnp.sqrt(D)
    lim2 = 1.0 / jnp.sqrt(H)
    params = {
        "w1": jax.random.uniform(kp[0], (D, H), jnp.float32, -lim1, lim1),
        "b1": jax.random.uniform(kp[1], (H,), jnp.float32, -lim1, lim1),
        "w2": jax.random.uniform(kp[2], (H, 1), jnp.float32, -lim2, lim2),
        "b2": jax.random.uniform(kp[3], (1,), jnp.float32, -lim2, lim2),
    }

    result = click_encoder_forward(title, graph, entity, abs_entity, subcat,
                                   params)
    result = jax.block_until_ready(result)

    ref = _reference([title, graph, entity, abs_entity, subcat], params)
    assert result.shape == (B, N, D)
    assert jnp.allclose(result, ref, atol=1e-5, rtol=1e-5), "mismatch vs reference"

    print("KERNEL_OK")
</pallas_src>

<mosaic_0001>
module attributes {stable_mosaic.version = 11 : i64} {
  func.func @_click_encoder_kernel(%arg0: i32, %arg1: memref<16x400xf32, #tpu.memory_space<vmem>>, %arg2: memref<16x400xf32, #tpu.memory_space<vmem>>, %arg3: memref<16x400xf32, #tpu.memory_space<vmem>>, %arg4: memref<16x400xf32, #tpu.memory_space<vmem>>, %arg5: memref<16x400xf32, #tpu.memory_space<vmem>>, %arg6: memref<400x128xf32, #tpu.memory_space<vmem>>, %arg7: memref<1x128xf32, #tpu.memory_space<vmem>>, %arg8: memref<1x128xf32, #tpu.memory_space<vmem>>, %arg9: memref<1x1xf32, #tpu.memory_space<smem>>, %arg10: memref<16x400xf32, #tpu.memory_space<vmem>>) attributes {dimension_semantics = [#tpu.dimension_semantics<parallel>], iteration_bounds = array<i64: 1>, scalar_prefetch = 0 : i64, scratch_operands = 0 : i64, tpu.core_type = #tpu.core_type<tc>, window_params = [{transform_indices = @transform_0, window_bounds = array<i64: 16, 400>}, {transform_indices = @transform_1, window_bounds = array<i64: 16, 400>}, {transform_indices = @transform_2, window_bounds = array<i64: 16, 400>}, {transform_indices = @transform_3, window_bounds = array<i64: 16, 400>}, {transform_indices = @transform_4, window_bounds = array<i64: 16, 400>}, {pipeline_mode = #tpu.pipeline_mode<synchronous>, transform_indices = @transform_5, window_bounds = array<i64: 400, 128>}, {pipeline_mode = #tpu.pipeline_mode<synchronous>, transform_indices = @transform_6, window_bounds = array<i64: 1, 128>}, {pipeline_mode = #tpu.pipeline_mode<synchronous>, transform_indices = @transform_7, window_bounds = array<i64: 1, 128>}, {transform_indices = @transform_8, window_bounds = array<i64: 1, 1>}, {transform_indices = @transform_9, window_bounds = array<i64: 16, 400>}]} {
    %c0 = arith.constant 0 : index
    %c0_0 = arith.constant 0 : index
    %0 = vector.load %arg6[%c0, %c0_0] : memref<400x128xf32, #tpu.memory_space<vmem>>, vector<400x128xf32>
    %c0_1 = arith.constant 0 : index
    %c0_2 = arith.constant 0 : index
    %1 = vector.load %arg7[%c0_1, %c0_2] : memref<1x128xf32, #tpu.memory_space<vmem>>, vector<1x128xf32>
    %c0_3 = arith.constant 0 : index
    %c0_4 = arith.constant 0 : index
    %2 = vector.load %arg8[%c0_3, %c0_4] : memref<1x128xf32, #tpu.memory_space<vmem>>, vector<1x128xf32>
    %c0_5 = arith.constant 0 : index
    %c0_6 = arith.constant 0 : index
    %3 = memref.load %arg9[%c0_5, %c0_6] : memref<1x1xf32, #tpu.memory_space<smem>>
    %c0_7 = arith.constant 0 : index
    %c0_8 = arith.constant 0 : index
    %4 = vector.load %arg1[%c0_7, %c0_8] : memref<16x400xf32, #tpu.memory_space<vmem>>, vector<16x400xf32>
    %cst = arith.constant dense<0.000000e+00> : vector<16x128xf32>
    %5 = tpu.matmul %4, %0, %cst {dimension_numbers = #tpu.dot_dimension_numbers<[1], [0], [0], [1], [0, 0, 1, 1], [], []>} : vector<16x400xf32>, vector<400x128xf32>, vector<16x128xf32> -> vector<16x128xf32>
    %6 = vector.broadcast %1 : vector<1x128xf32> to vector<16x128xf32>
    %7 = arith.addf %5, %6 : vector<16x128xf32>
    %8 = math.tanh %7 : vector<16x128xf32>
    %9 = vector.broadcast %2 : vector<1x128xf32> to vector<16x128xf32>
    %10 = arith.mulf %8, %9 : vector<16x128xf32>
    %cst_9 = arith.constant dense<0.000000e+00> : vector<16xf32>
    %11 = vector.multi_reduction <add>, %10, %cst_9 [1] : vector<16x128xf32> to vector<16xf32>
    %12 = vector.shape_cast %11 : vector<16xf32> to vector<16x1xf32>
    %13 = vector.broadcast %3 : f32 to vector<16x1xf32>
    %14 = arith.addf %12, %13 : vector<16x1xf32>
    %15 = math.exp %14 : vector<16x1xf32>
    %c0_10 = arith.constant 0 : index
    %c0_11 = arith.constant 0 : index
    %16 = vector.load %arg2[%c0_10, %c0_11] : memref<16x400xf32, #tpu.memory_space<vmem>>, vector<16x400xf32>
    %cst_12 = arith.constant dense<0.000000e+00> : vector<16x128xf32>
    %17 = tpu.matmul %16, %0, %cst_12 {dimension_numbers = #tpu.dot_dimension_numbers<[1], [0], [0], [1], [0, 0, 1, 1], [], []>} : vector<16x400xf32>, vector<400x128xf32>, vector<16x128xf32> -> vector<16x128xf32>
    %18 = vector.broadcast %1 : vector<1x128xf32> to vector<16x128xf32>
    %19 = arith.addf %17, %18 : vector<16x128xf32>
    %20 = math.tanh %19 : vector<16x128xf32>
    %21 = vector.broadcast %2 : vector<1x128xf32> to vector<16x128xf32>
    %22 = arith.mulf %20, %21 : vector<16x128xf32>
    %cst_13 = arith.constant dense<0.000000e+00> : vector<16xf32>
    %23 = vector.multi_reduction <add>, %22, %cst_13 [1] : vector<16x128xf32> to vector<16xf32>
    %24 = vector.shape_cast %23 : vector<16xf32> to vector<16x1xf32>
    %25 = vector.broadcast %3 : f32 to vector<16x1xf32>
    %26 = arith.addf %24, %25 : vector<16x1xf32>
    %27 = math.exp %26 : vector<16x1xf32>
    %c0_14 = arith.constant 0 : index
    %c0_15 = arith.constant 0 : index
    %28 = vector.load %arg3[%c0_14, %c0_15] : memref<16x400xf32, #tpu.memory_space<vmem>>, vector<16x400xf32>
    %cst_16 = arith.constant dense<0.000000e+00> : vector<16x128xf32>
    %29 = tpu.matmul %28, %0, %cst_16 {dimension_numbers = #tpu.dot_dimension_numbers<[1], [0], [0], [1], [0, 0, 1, 1], [], []>} : vector<16x400xf32>, vector<400x128xf32>, vector<16x128xf32> -> vector<16x128xf32>
    %30 = vector.broadcast %1 : vector<1x128xf32> to vector<16x128xf32>
    %31 = arith.addf %29, %30 : vector<16x128xf32>
    %32 = math.tanh %31 : vector<16x128xf32>
    %33 = vector.broadcast %2 : vector<1x128xf32> to vector<16x128xf32>
    %34 = arith.mulf %32, %33 : vector<16x128xf32>
    %cst_17 = arith.constant dense<0.000000e+00> : vector<16xf32>
    %35 = vector.multi_reduction <add>, %34, %cst_17 [1] : vector<16x128xf32> to vector<16xf32>
    %36 = vector.shape_cast %35 : vector<16xf32> to vector<16x1xf32>
    %37 = vector.broadcast %3 : f32 to vector<16x1xf32>
    %38 = arith.addf %36, %37 : vector<16x1xf32>
    %39 = math.exp %38 : vector<16x1xf32>
    %c0_18 = arith.constant 0 : index
    %c0_19 = arith.constant 0 : index
    %40 = vector.load %arg4[%c0_18, %c0_19] : memref<16x400xf32, #tpu.memory_space<vmem>>, vector<16x400xf32>
    %cst_20 = arith.constant dense<0.000000e+00> : vector<16x128xf32>
    %41 = tpu.matmul %40, %0, %cst_20 {dimension_numbers = #tpu.dot_dimension_numbers<[1], [0], [0], [1], [0, 0, 1, 1], [], []>} : vector<16x400xf32>, vector<400x128xf32>, vector<16x128xf32> -> vector<16x128xf32>
    %42 = vector.broadcast %1 : vector<1x128xf32> to vector<16x128xf32>
    %43 = arith.addf %41, %42 : vector<16x128xf32>
    %44 = math.tanh %43 : vector<16x128xf32>
    %45 = vector.broadcast %2 : vector<1x128xf32> to vector<16x128xf32>
    %46 = arith.mulf %44, %45 : vector<16x128xf32>
    %cst_21 = arith.constant dense<0.000000e+00> : vector<16xf32>
    %47 = vector.multi_reduction <add>, %46, %cst_21 [1] : vector<16x128xf32> to vector<16xf32>
    %48 = vector.shape_cast %47 : vector<16xf32> to vector<16x1xf32>
    %49 = vector.broadcast %3 : f32 to vector<16x1xf32>
    %50 = arith.addf %48, %49 : vector<16x1xf32>
    %51 = math.exp %50 : vector<16x1xf32>
    %c0_22 = arith.constant 0 : index
    %c0_23 = arith.constant 0 : index
    %52 = vector.load %arg5[%c0_22, %c0_23] : memref<16x400xf32, #tpu.memory_space<vmem>>, vector<16x400xf32>
    %cst_24 = arith.constant dense<0.000000e+00> : vector<16x128xf32>
    %53 = tpu.matmul %52, %0, %cst_24 {dimension_numbers = #tpu.dot_dimension_numbers<[1], [0], [0], [1], [0, 0, 1, 1], [], []>} : vector<16x400xf32>, vector<400x128xf32>, vector<16x128xf32> -> vector<16x128xf32>
    %54 = vector.broadcast %1 : vector<1x128xf32> to vector<16x128xf32>
    %55 = arith.addf %53, %54 : vector<16x128xf32>
    %56 = math.tanh %55 : vector<16x128xf32>
    %57 = vector.broadcast %2 : vector<1x128xf32> to vector<16x128xf32>
    %58 = arith.mulf %56, %57 : vector<16x128xf32>
    %cst_25 = arith.constant dense<0.000000e+00> : vector<16xf32>
    %59 = vector.multi_reduction <add>, %58, %cst_25 [1] : vector<16x128xf32> to vector<16xf32>
    %60 = vector.shape_cast %59 : vector<16xf32> to vector<16x1xf32>
    %61 = vector.broadcast %3 : f32 to vector<16x1xf32>
    %62 = arith.addf %60, %61 : vector<16x1xf32>
    %63 = math.exp %62 : vector<16x1xf32>
    %64 = arith.addf %15, %27 : vector<16x1xf32>
    %65 = arith.addf %64, %39 : vector<16x1xf32>
    %66 = arith.addf %65, %51 : vector<16x1xf32>
    %67 = arith.addf %66, %63 : vector<16x1xf32>
    %cst_26 = arith.constant 9.99999993E-9 : f32
    %68 = vector.broadcast %cst_26 : f32 to vector<16x1xf32>
    %69 = arith.addf %67, %68 : vector<16x1xf32>
    %70 = tpu.reciprocal %69 : vector<16x1xf32> -> vector<16x1xf32>
    %71 = arith.mulf %15, %70 : vector<16x1xf32>
    %72 = vector.broadcast %71 : vector<16x1xf32> to vector<16x400xf32>
    %73 = arith.mulf %4, %72 : vector<16x400xf32>
    %74 = arith.mulf %27, %70 : vector<16x1xf32>
    %75 = vector.broadcast %74 : vector<16x1xf32> to vector<16x400xf32>
    %76 = arith.mulf %16, %75 : vector<16x400xf32>
    %77 = arith.addf %73, %76 : vector<16x400xf32>
    %78 = arith.mulf %39, %70 : vector<16x1xf32>
    %79 = vector.broadcast %78 : vector<16x1xf32> to vector<16x400xf32>
    %80 = arith.mulf %28, %79 : vector<16x400xf32>
    %81 = arith.addf %77, %80 : vector<16x400xf32>
    %82 = arith.mulf %51, %70 : vector<16x1xf32>
    %83 = vector.broadcast %82 : vector<16x1xf32> to vector<16x400xf32>
    %84 = arith.mulf %40, %83 : vector<16x400xf32>
    %85 = arith.addf %81, %84 : vector<16x400xf32>
    %86 = arith.mulf %63, %70 : vector<16x1xf32>
    %87 = vector.broadcast %86 : vector<16x1xf32> to vector<16x400xf32>
    %88 = arith.mulf %52, %87 : vector<16x400xf32>
    %89 = arith.addf %85, %88 : vector<16x400xf32>
    %c0_27 = arith.constant 0 : index
    %c0_28 = arith.constant 0 : index
    %90 = vector.load %arg10[%c0_27, %c0_28] : memref<16x400xf32, #tpu.memory_space<vmem>>, vector<16x400xf32>
    tpu.vector_store %arg10[%c0_27, %c0_28], %89 {strides = array<i32>} : memref<16x400xf32, #tpu.memory_space<vmem>>, vector<16x400xf32>,
    return
  }
  func.func @transform_0(%arg0: i32) -> (i32, i32) {
    %c0_i32 = arith.constant 0 : i32
    %c0_i32_0 = arith.constant 0 : i32
    return %arg0, %c0_i32 : i32, i32
  }
  func.func @transform_1(%arg0: i32) -> (i32, i32) {
    %c0_i32 = arith.constant 0 : i32
    %c0_i32_0 = arith.constant 0 : i32
    return %arg0, %c0_i32 : i32, i32
  }
  func.func @transform_2(%arg0: i32) -> (i32, i32) {
    %c0_i32 = arith.constant 0 : i32
    %c0_i32_0 = arith.constant 0 : i32
    return %arg0, %c0_i32 : i32, i32
  }
  func.func @transform_3(%arg0: i32) -> (i32, i32) {
    %c0_i32 = arith.constant 0 : i32
    %c0_i32_0 = arith.constant 0 : i32
    return %arg0, %c0_i32 : i32, i32
  }
  func.func @transform_4(%arg0: i32) -> (i32, i32) {
    %c0_i32 = arith.constant 0 : i32
    %c0_i32_0 = arith.constant 0 : i32
    return %arg0, %c0_i32 : i32, i32
  }
  func.func @transform_5(%arg0: i32) -> (i32, i32) {
    %c0_i32 = arith.constant 0 : i32
    %c0_i32_0 = arith.constant 0 : i32
    %c0_i32_1 = arith.constant 0 : i32
    return %c0_i32, %c0_i32_0 : i32, i32
  }
  func.func @transform_6(%arg0: i32) -> (i32, i32) {
    %c0_i32 = arith.constant 0 : i32
    %c0_i32_0 = arith.constant 0 : i32
    %c0_i32_1 = arith.constant 0 : i32
    return %c0_i32, %c0_i32_0 : i32, i32
  }
  func.func @transform_7(%arg0: i32) -> (i32, i32) {
    %c0_i32 = arith.constant 0 : i32
    %c0_i32_0 = arith.constant 0 : i32
    %c0_i32_1 = arith.constant 0 : i32
    return %c0_i32, %c0_i32_0 : i32, i32
  }
  func.func @transform_8(%arg0: i32) -> (i32, i32) {
    %c0_i32 = arith.constant 0 : i32
    %c0_i32_0 = arith.constant 0 : i32
    %c0_i32_1 = arith.constant 0 : i32
    return %c0_i32, %c0_i32_0 : i32, i32
  }
  func.func @transform_9(%arg0: i32) -> (i32, i32) {
    %c0_i32 = arith.constant 0 : i32
    %c0_i32_0 = arith.constant 0 : i32
    return %arg0, %c0_i32 : i32, i32
  }
}

</mosaic_0001>

<llo_original>
// kernel: tpu_custom_call.1
$region0: #{tpu_custom_call.1}
  #allocation0 [shape = 'u32[]', space=smem, size = 0x4, offset = 0x4, fixed_abs, tag = 'smem constant byte address 0x4 - core index']
  #allocation1 [shape = 'u32[144,128]{1,0:T(1,128)}', space=vmem, size = 0x12000, scoped, tag = 'internal scratch']
  #allocation2 [shape = 'f32[1,1]{1,0:T(1,128)S(6)}', space=smem, size = 0x200, scoped, tag = 'scoped memory for tpu_custom_call.1']
  %s0 = inlined_call_operand.hbm [shape: f32[16,400], index: 0, kind: input, shape index: {}]
  %s1 = inlined_call_operand.hbm [shape: f32[16,400], index: 1, kind: input, shape index: {}]
  %s2 = inlined_call_operand.hbm [shape: f32[16,400], index: 2, kind: input, shape index: {}]
  %s3 = inlined_call_operand.hbm [shape: f32[16,400], index: 3, kind: input, shape index: {}]
  %s4 = inlined_call_operand.hbm [shape: f32[16,400], index: 4, kind: input, shape index: {}]
  %s5 = inlined_call_operand.hbm [shape: f32[400,128], index: 5, kind: input, shape index: {}]
  %s6 = inlined_call_operand.vmem [shape: f32[1,128], index: 6, kind: input, shape index: {}]
  %s7 = inlined_call_operand.vmem [shape: f32[1,128], index: 7, kind: input, shape index: {}]
  %s8 = inlined_call_operand.<no memory space> [shape: f32[1,1], index: 8, kind: input, shape index: {}]
  %s9 = inlined_call_operand.hbm [shape: f32[16,400], index: 9, kind: output, shape index: {}]
  %s10 = sld [smem:[#allocation0]]
  $region70: #{tpu_custom_call.1} parent=0
    _
  %s12 = ssub.s32 1, %s10
  %s13 = scalar_select 0, %s12, %s10
  %14 = sst [smem:[#allocation2]] %s8
  $region1: #{tpu_custom_call.1} parent=0
    #allocation3 [shape = 'u8[32768]{0}', space=vmem, size = 0x8000, scoped, tag = 'input window, operand 0, single buffered']
    #allocation4 [shape = 's32[1]{0}', space=sflag, size = 0x4, scoped, tag = 'scoped memory for tpu_custom_call.1']
    #allocation5 [shape = 's32[1]{0}', space=sflag, size = 0x4, scoped, tag = 'scoped memory for tpu_custom_call.1']
    #allocation6 [shape = 'u8[32768]{0}', space=vmem, size = 0x8000, scoped, tag = 'input window, operand 1, single buffered']
    #allocation7 [shape = 's32[1]{0}', space=sflag, size = 0x4, scoped, tag = 'scoped memory for tpu_custom_call.1']
    #allocation8 [shape = 'u8[32768]{0}', space=vmem, size = 0x8000, scoped, tag = 'input window, operand 2, single buffered']
    #allocation9 [shape = 'u8[32768]{0}', space=vmem, size = 0x8000, scoped, tag = 'input window, operand 3, single buffered']
    #allocation10 [shape = 's32[1]{0}', space=sflag, size = 0x4, scoped, tag = 'scoped memory for tpu_custom_call.1']
    #allocation11 [shape = 'u8[32768]{0}', space=vmem, size = 0x8000, scoped, tag = 'input window, operand 4, single buffered']
    #allocation12 [shape = 'u8[204800]{0}', space=vmem, size = 0x32000, scoped, tag = 'input window, operand 5, single buffered']
    #allocation13 [shape = 's32[1]{0}', space=sflag, size = 0x4, scoped, tag = 'scoped memory for tpu_custom_call.1']
    #allocation14 [shape = 'u8[32768]{0}', space=vmem, size = 0x8000, scoped, tag = 'output window, operand 0, single buffered']
    %15 = vsyncpa [#allocation4], 0
    %16 = vsyncpa [#allocation7], 0
    %17 = vsyncpa [#allocation10], 0
    %18 = vsyncpa [#allocation13], 0
    %19 = vsyncpa [#allocation5], 0
    // Predicated region
    $region2: #{tpu_custom_call.1} parent=1 // pred_check
      _
    $region3: #{tpu_custom_call.1} parent=1 // pred_check_branch
      %21 = sbr.rel (0) target = $region5
    $region4: #{tpu_custom_call.1} parent=1 // pred_region
      %s23 = ssub.s32 1024, 1024
      %24 = vsyncadd [#allocation4], %s23
      %s25 = sshll.u32 [#allocation3], 4
      %s26 = int_to_ptr.vmem [resolvable:$true] %s25
      %31 = dma.hbm_to_vmem [thread:$0]  %s0, 1024, %s26, [#allocation4], 512, 512, 32
    $region5: #{tpu_custom_call.1} parent=1 // pred_fallthru
      _
    // Predicated region
    $region6: #{tpu_custom_call.1} parent=1 // pred_check
      _
    $region7: #{tpu_custom_call.1} parent=1 // pred_check_branch
      %33 = sbr.rel (0) target = $region9
    $region8: #{tpu_custom_call.1} parent=1 // pred_region
      %s35 = ssub.s32 1024, 1024
      %36 = vsyncadd [#allocation7], %s35
      %s37 = sshll.u32 [#allocation6], 4
      %s38 = int_to_ptr.vmem [resolvable:$true] %s37
      %43 = dma.hbm_to_vmem [thread:$0]  %s1, 1024, %s38, [#allocation7], 512, 512, 32
    $region9: #{tpu_custom_call.1} parent=1 // pred_fallthru
      _
    // Predicated region
    $region10: #{tpu_custom_call.1} parent=1 // pred_check
      _
    $region11: #{tpu_custom_call.1} parent=1 // pred_check_branch
      %45 = sbr.rel (0) target = $region13
    $region12: #{tpu_custom_call.1} parent=1 // pred_region
      %s47 = ssub.s32 1024, 1024
      %48 = vsyncadd [#allocation7], %s47
      %s49 = sshll.u32 [#allocation8], 4
      %s50 = int_to_ptr.vmem [resolvable:$true] %s49
      %55 = dma.hbm_to_vmem [thread:$0]  %s2, 1024, %s50, [#allocation7], 512, 512, 32
    $region13: #{tpu_custom_call.1} parent=1 // pred_fallthru
      _
    // Predicated region
    $region14: #{tpu_custom_call.1} parent=1 // pred_check
      _
    $region15: #{tpu_custom_call.1} parent=1 // pred_check_branch
      %57 = sbr.rel (0) target = $region17
    $region16: #{tpu_custom_call.1} parent=1 // pred_region
      %s59 = ssub.s32 1024, 1024
      %60 = vsyncadd [#allocation10], %s59
      %s61 = sshll.u32 [#allocation9], 4
      %s62 = int_to_ptr.vmem [resolvable:$true] %s61
      %67 = dma.hbm_to_vmem [thread:$0]  %s3, 1024, %s62, [#allocation10], 512, 512, 32
    $region17: #{tpu_custom_call.1} parent=1 // pred_fallthru
      _
    // Predicated region
    $region18: #{tpu_custom_call.1} parent=1 // pred_check
      _
    $region19: #{tpu_custom_call.1} parent=1 // pred_check_branch
      %69 = sbr.rel (0) target = $region21
    $region20: #{tpu_custom_call.1} parent=1 // pred_region
      %s71 = ssub.s32 1024, 1024
      %72 = vsyncadd [#allocation10], %s71
      %s73 = sshll.u32 [#allocation11], 4
      %s74 = int_to_ptr.vmem [resolvable:$true] %s73
      %79 = dma.hbm_to_vmem [thread:$0]  %s4, 1024, %s74, [#allocation10], 512, 512, 32
    $region21: #{tpu_custom_call.1} parent=1 // pred_fallthru
      _
    // Predicated region
    $region22: #{tpu_custom_call.1} parent=1 // pred_check
      _
    $region23: #{tpu_custom_call.1} parent=1 // pred_check_branch
      %81 = sbr.rel (0) target = $region25
    $region24: #{tpu_custom_call.1} parent=1 // pred_region
      %s83 = ssub.s32 6400, 6400
      %84 = vsyncadd [#allocation13], %s83
      %s85 = sshll.u32 [#allocation12], 4
      %s86 = int_to_ptr.vmem [resolvable:$true] %s85
      %91 = dma.hbm_to_vmem [thread:$0]  %s5, 6400, %s86, [#allocation13], 128, 128, 8
    $region25: #{tpu_custom_call.1} parent=1 // pred_fallthru
      _
    // Predicated region
    $region26: #{tpu_custom_call.1} parent=1 // pred_check
      _
    $region27: #{tpu_custom_call.1} parent=1 // pred_check_branch
      %93 = sbr.rel (0) target = $region29
    $region28: #{tpu_custom_call.1} parent=1 // pred_region
      _
    $region29: #{tpu_custom_call.1} parent=1 // pred_fallthru
      _
    // Predicated region
    $region30: #{tpu_custom_call.1} parent=1 // pred_check
      _
    $region31: #{tpu_custom_call.1} parent=1 // pred_check_branch
      %95 = sbr.rel (0) target = $region33
    $region32: #{tpu_custom_call.1} parent=1 // pred_region
      _
    $region33: #{tpu_custom_call.1} parent=1 // pred_fallthru
      _
    // Predicated region
    $region34: #{tpu_custom_call.1} parent=1 // pred_check
      _
    $region35: #{tpu_custom_call.1} parent=1 // pred_check_branch
      %97 = sbr.rel (0) target = $region37
    $region36: #{tpu_custom_call.1} parent=1 // pred_region
      _
    $region37: #{tpu_custom_call.1} parent=1 // pred_fallthru
      _
    // Predicated region
    $region38: #{tpu_custom_call.1} parent=1 // pred_check
      _
    $region39: #{tpu_custom_call.1} parent=1 // pred_check_branch
      %99 = sbr.rel (0) target = $region41
    $region40: #{tpu_custom_call.1} parent=1 // pred_region
      %100 = dma.done [#allocation4], 1024
    $region41: #{tpu_custom_call.1} parent=1 // pred_fallthru
      _
    // Predicated region
    $region42: #{tpu_custom_call.1} parent=1 // pred_check
      _
    $region43: #{tpu_custom_call.1} parent=1 // pred_check_branch
      %102 = sbr.rel (0) target = $region45
    $region44: #{tpu_custom_call.1} parent=1 // pred_region
      %103 = dma.done [#allocation7], 1024
    $region45: #{tpu_custom_call.1} parent=1 // pred_fallthru
      _
    // Predicated region
    $region46: #{tpu_custom_call.1} parent=1 // pred_check
      _
    $region47: #{tpu_custom_call.1} parent=1 // pred_check_branch
      %105 = sbr.rel (0) target = $region49
    $region48: #{tpu_custom_call.1} parent=1 // pred_region
      %106 = dma.done [#allocation7], 1024
    $region49: #{tpu_custom_call.1} parent=1 // pred_fallthru
      _
    // Predicated region
    $region50: #{tpu_custom_call.1} parent=1 // pred_check
      _
    $region51: #{tpu_custom_call.1} parent=1 // pred_check_branch
      %108 = sbr.rel (0) target = $region53
    $region52: #{tpu_custom_call.1} parent=1 // pred_region
      %109 = dma.done [#allocation10], 1024
    $region53: #{tpu_custom_call.1} parent=1 // pred_fallthru
      _
    // Predicated region
    $region54: #{tpu_custom_call.1} parent=1 // pred_check
      _
    $region55: #{tpu_custom_call.1} parent=1 // pred_check_branch
      %111 = sbr.rel (0) target = $region57
    $region56: #{tpu_custom_call.1} parent=1 // pred_region
      %112 = dma.done [#allocation10], 1024
    $region57: #{tpu_custom_call.1} parent=1 // pred_fallthru
      _
    // Predicated region
    $region58: #{tpu_custom_call.1} parent=1 // pred_check
      _
    $region59: #{tpu_custom_call.1} parent=1 // pred_check_branch
      %114 = sbr.rel (0) target = $region61
    $region60: #{tpu_custom_call.1} parent=1 // pred_region
      %115 = dma.done [#allocation13], 6400
    $region61: #{tpu_custom_call.1} parent=1 // pred_fallthru
      _
    %v116 = vld [vmem:[#allocation12] sm:$0xff]
    %v117 = vld [vmem:[#allocation12 + $0x8] sm:$0xff]
    %v118 = vld [vmem:[#allocation12 + $0x10] sm:$0xff]
    %v119 = vld [vmem:[#allocation12 + $0x18] sm:$0xff]
    %v120 = vld [vmem:[#allocation12 + $0x20] sm:$0xff]
    %v121 = vld [vmem:[#allocation12 + $0x28] sm:$0xff]
    %v122 = vld [vmem:[#allocation12 + $0x30] sm:$0xff]
    %v123 = vld [vmem:[#allocation12 + $0x38] sm:$0xff]
    %v124 = vld [vmem:[#allocation12 + $0x40] sm:$0xff]
    %v125 = vld [vmem:[#allocation12 + $0x48] sm:$0xff]
    %v126 = vld [vmem:[#allocation12 + $0x50] sm:$0xff]
    %v127 = vld [vmem:[#allocation12 + $0x58] sm:$0xff]
    %v128 = vld [vmem:[#allocation12 + $0x60] sm:$0xff]
    %v129 = vld [vmem:[#allocation12 + $0x68] sm:$0xff]
    %v130 = vld [vmem:[#allocation12 + $0x70] sm:$0xff]
    %v131 = vld [vmem:[#allocation12 + $0x78] sm:$0xff]
    %v132 = vld [vmem:[#allocation12 + $0x80] sm:$0xff]
    %v133 = vld [vmem:[#allocation12 + $0x88] sm:$0xff]
    %v134 = vld [vmem:[#allocation12 + $0x90] sm:$0xff]
    %v135 = vld [vmem:[#allocation12 + $0x98] sm:$0xff]
    %v136 = vld [vmem:[#allocation12 + $0xa0] sm:$0xff]
    %v137 = vld [vmem:[#allocation12 + $0xa8] sm:$0xff]
    %v138 = vld [vmem:[#allocation12 + $0xb0] sm:$0xff]
    %v139 = vld [vmem:[#allocation12 + $0xb8] sm:$0xff]
    %v140 = vld [vmem:[#allocation12 + $0xc0] sm:$0xff]
    %v141 = vld [vmem:[#allocation12 + $0xc8] sm:$0xff]
    %v142 = vld [vmem:[#allocation12 + $0xd0] sm:$0xff]
    %v143 = vld [vmem:[#allocation12 + $0xd8] sm:$0xff]
    %v144 = vld [vmem:[#allocation12 + $0xe0] sm:$0xff]
    %v145 = vld [vmem:[#allocation12 + $0xe8] sm:$0xff]
    %v146 = vld [vmem:[#allocation12 + $0xf0] sm:$0xff]
    %v147 = vld [vmem:[#allocation12 + $0xf8] sm:$0xff]
    %v148 = vld [vmem:[#allocation12 + $0x100] sm:$0xff]
    %v149 = vld [vmem:[#allocation12 + $0x108] sm:$0xff]
    %v150 = vld [vmem:[#allocation12 + $0x110] sm:$0xff]
    %v151 = vld [vmem:[#allocation12 + $0x118] sm:$0xff]
    %v152 = vld [vmem:[#allocation12 + $0x120] sm:$0xff]
    %v153 = vld [vmem:[#allocation12 + $0x128] sm:$0xff]
    %v154 = vld [vmem:[#allocation12 + $0x130] sm:$0xff]
    %v155 = vld [vmem:[#allocation12 + $0x138] sm:$0xff]
    %v156 = vld [vmem:[#allocation12 + $0x140] sm:$0xff]
    %v157 = vld [vmem:[#allocation12 + $0x148] sm:$0xff]
    %v158 = vld [vmem:[#allocation12 + $0x150] sm:$0xff]
    %v159 = vld [vmem:[#allocation12 + $0x158] sm:$0xff]
    %v160 = vld [vmem:[#allocation12 + $0x160] sm:$0xff]
    %v161 = vld [vmem:[#allocation12 + $0x168] sm:$0xff]
    %v162 = vld [vmem:[#allocation12 + $0x170] sm:$0xff]
    %v163 = vld [vmem:[#allocation12 + $0x178] sm:$0xff]
    %v164 = vld [vmem:[#allocation12 + $0x180] sm:$0xff]
    %v165 = vld [vmem:[#allocation12 + $0x188] sm:$0xff]
    %v166 = vld [vmem:[%s6] sm:$0x1]
    %v167 = vld [vmem:[%s7] sm:$0x1]
    %s168 = sld [smem:[#allocation2]]
    %v169 = vld [vmem:[#allocation3] sm:$0xff]
    %v170 = vld [vmem:[#allocation3 + $0x8] sm:$0xff]
    %v171 = vld [vmem:[#allocation3 + $0x10] sm:$0xff]
    %v172 = vld [vmem:[#allocation3 + $0x18] sm:$0xff]
    %v173 = vld [vmem:[#allocation3 + $0x20] sm:$0xff]
    %v174 = vld [vmem:[#allocation3 + $0x28] sm:$0xff]
    %v175 = vld [vmem:[#allocation3 + $0x30] sm:$0xff]
    %v176 = vld [vmem:[#allocation3 + $0x38] sm:$0xff]
    %v178 = vlaneseq
    %v179 = vshrl.u32 %v178, 7
    %v180 = vsub.s32 0, %v179
    %v181 = vrot.slane %v166, %v180
    %vm183 = vcmask 130048
    %v185 = vsel %vm183, %v172, 0
    %v188 = vsel %vm183, %v176, 0
    %190 = vmatprep.subr.mxu0 0.0
    %191 = vmatpush1.msra.mxu0 %v116
    %192 = vmatprep.subr.mxu0 0.0
    %193 = vmatpush1.msra.mxu0 %v117
    %194 = vmatprep.subr.mxu0 0.0
    %195 = vmatpush1.msra.mxu0 %v118
    %196 = vmatprep.subr.mxu0 0.0
    %197 = vmatpush1.msra.mxu0 %v119
    %198 = vmatprep.subr.mxu0 0.0
    %199 = vmatpush1.msra.mxu0 %v120
    %200 = vmatprep.subr.mxu0 0.0
    %201 = vmatpush1.msra.mxu0 %v121
    %202 = vmatprep.subr.mxu0 0.0
    %203 = vmatpush1.msra.mxu0 %v122
    %204 = vmatprep.subr.mxu0 0.0
    %205 = vmatpush1.msra.mxu0 %v123
    %206 = vmatprep.subr.mxu0 0.0
    %207 = vmatpush1.msra.mxu0 %v124
    %208 = vmatprep.subr.mxu0 0.0
    %209 = vmatpush1.msra.mxu0 %v125
    %210 = vmatprep.subr.mxu0 0.0
    %211 = vmatpush1.msra.mxu0 %v126
    %212 = vmatprep.subr.mxu0 0.0
    %213 = vmatpush1.msra.mxu0 %v127
    %214 = vmatprep.subr.mxu0 0.0
    %215 = vmatpush1.msra.mxu0 %v128
    %216 = vmatprep.subr.mxu0 0.0
    %217 = vmatpush1.msra.mxu0 %v129
    %218 = vmatprep.subr.mxu0 0.0
    %219 = vmatpush1.msra.mxu0 %v130
    %220 = vmatprep.subr.mxu0 0.0
    %221 = vmatpush1.msra.mxu0 %v131
    %222 = vmatprep.subr.mxu0 0.0
    %223 = vmatpush1.msra.mxu0 %v132
    %224 = vmatprep.subr.mxu0 0.0
    %225 = vmatpush1.msra.mxu0 %v133
    %226 = vmatprep.subr.mxu0 0.0
    %227 = vmatpush1.msra.mxu0 %v134
    %228 = vmatprep.subr.mxu0 0.0
    %229 = vmatpush1.msra.mxu0 %v135
    %230 = vmatprep.subr.mxu0 0.0
    %231 = vmatpush1.msra.mxu0 %v136
    %232 = vmatprep.subr.mxu0 0.0
    %233 = vmatpush1.msra.mxu0 %v137
    %234 = vmatprep.subr.mxu0 0.0
    %235 = vmatpush1.msra.mxu0 %v138
    %236 = vmatprep.subr.mxu0 0.0
    %237 = vmatpush1.msra.mxu0 %v139
    %238 = vmatprep.subr.mxu0 0.0
    %239 = vmatpush1.msra.mxu0 %v140
    %240 = vmatprep.subr.mxu0 0.0
    %241 = vmatpush1.msra.mxu0 %v141
    %242 = vmatprep.subr.mxu0 0.0
    %243 = vmatpush1.msra.mxu0 %v142
    %244 = vmatprep.subr.mxu0 0.0
    %245 = vmatpush1.msra.mxu0 %v143
    %246 = vmatprep.subr.mxu0 0.0
    %247 = vmatpush1.msra.mxu0 %v144
    %248 = vmatprep.subr.mxu0 0.0
    %249 = vmatpush1.msra.mxu0 %v145
    %250 = vmatprep.subr.mxu0 0.0
    %251 = vmatpush1.msra.mxu0 %v146
    %252 = vmatprep.subr.mxu0 0.0
    %253 = vmatpush1.msra.mxu0 %v147
    %254 = vmatprep.mubr.f32.mxu0 %v170
    %255 = vmatmul.mubr.f32.gmra.mrb[0].mxu0 %v169
    %v256 = vpop.f32.mrb[0].mxu0
    %v257 = vadd.f32 %v181, %v256
    %v258 = vpop.f32.mrb[0].mxu0
    %259 = vmatprep.mubr.f32.mxu0 %v174
    %260 = vmatmul.mubr.f32.gmra.mrb[0].mxu0 %v173
    %v261 = vpop.f32.mrb[0].mxu0
    %v262 = vadd.f32 %v181, %v261
    %v263 = vpop.f32.mrb[0].mxu0
    %264 = vdwg.mxu0
    %265 = vmatprep.subr.mxu0 0.0
    %266 = vmatpush1.msra.mxu0 %v148
    %267 = vmatprep.subr.mxu0 0.0
    %268 = vmatpush1.msra.mxu0 %v149
    %269 = vmatprep.subr.mxu0 0.0
    %270 = vmatpush1.msra.mxu0 %v150
    %271 = vmatprep.subr.mxu0 0.0
    %272 = vmatpush1.msra.mxu0 %v151
    %273 = vmatprep.subr.mxu0 0.0
    %274 = vmatpush1.msra.mxu0 %v152
    %275 = vmatprep.subr.mxu0 0.0
    %276 = vmatpush1.msra.mxu0 %v153
    %277 = vmatprep.subr.mxu0 0.0
    %278 = vmatpush1.msra.mxu0 %v154
    %279 = vmatprep.subr.mxu0 0.0
    %280 = vmatpush1.msra.mxu0 %v155
    %281 = vmatprep.subr.mxu0 0.0
    %282 = vmatpush1.msra.mxu0 %v156
    %283 = vmatprep.subr.mxu0 0.0
    %284 = vmatpush1.msra.mxu0 %v157
    %285 = vmatprep.subr.mxu0 0.0
    %286 = vmatpush1.msra.mxu0 %v158
    %287 = vmatprep.subr.mxu0 0.0
    %288 = vmatpush1.msra.mxu0 %v159
    %289 = vmatprep.subr.mxu0 0.0
    %290 = vmatpush1.msra.mxu0 %v160
    %291 = vmatprep.subr.mxu0 0.0
    %292 = vmatpush1.msra.mxu0 %v161
    %293 = vmatprep.subr.mxu0 0.0
    %294 = vmatpush1.msra.mxu0 %v162
    %295 = vmatprep.subr.mxu0 0.0
    %296 = vmatpush1.msra.mxu0 %v163
    %297 = vmatprep.subr.mxu0 0.0
    %298 = vmatpush1.msra.mxu0 %v164
    %299 = vmatprep.subr.mxu0 0.0
    %300 = vmatpush1.msra.mxu0 %v165
    %301 = vmatprep.subr.mxu0 0.0
    %302 = vmatpush1.msra.mxu0 0.0
    %303 = vmatprep.subr.mxu0 0.0
    %304 = vmatpush1.msra.mxu0 0.0
    %305 = vmatprep.subr.mxu0 0.0
    %306 = vmatpush1.msra.mxu0 0.0
    %307 = vmatprep.subr.mxu0 0.0
    %308 = vmatpush1.msra.mxu0 0.0
    %309 = vmatprep.subr.mxu0 0.0
    %310 = vmatpush1.msra.mxu0 0.0
    %311 = vmatprep.subr.mxu0 0.0
    %312 = vmatpush1.msra.mxu0 0.0
    %313 = vmatprep.subr.mxu0 0.0
    %314 = vmatpush1.msra.mxu0 0.0
    %315 = vmatprep.subr.mxu0 0.0
    %316 = vmatpush1.msra.mxu0 0.0
    %317 = vmatprep.subr.mxu0 0.0
    %318 = vmatpush1.msra.mxu0 0.0
    %319 = vmatprep.subr.mxu0 0.0
    %320 = vmatpush1.msra.mxu0 0.0
    %321 = vmatprep.subr.mxu0 0.0
    %322 = vmatpush1.msra.mxu0 0.0
    %323 = vmatprep.subr.mxu0 0.0
    %324 = vmatpush1.msra.mxu0 0.0
    %325 = vmatprep.subr.mxu0 0.0
    %326 = vmatpush1.msra.mxu0 0.0
    %327 = vmatprep.subr.mxu0 0.0
    %328 = vmatpush1.msra.mxu0 0.0
    %329 = vmatprep.mubr.f32.mxu0 %v185
    %330 = vmatmul.mubr.f32.gmra.mrb[0].mxu0 %v171
    %v331 = vpop.f32.mrb[0].mxu0
    %v332 = vadd.f32 %v257, %v331
    %v333 = vpop.f32.mrb[0].mxu0
    %334 = vmatprep.mubr.f32.mxu0 %v188
    %335 = vmatmul.mubr.f32.gmra.mrb[0].mxu0 %v175
    %v336 = vpop.f32.mrb[0].mxu0
    %v337 = vadd.f32 %v262, %v336
    %v338 = vpop.f32.mrb[0].mxu0
    %339 = vdwg.mxu0
    %v340 = vtanh.pop %v332
    %v341 = vtanh.pop %v337
    %v343 = vlaneseq
    %v344 = vshrl.u32 %v343, 7
    %v345 = vsub.s32 0, %v344
    %v346 = vrot.slane %v167, %v345
    %v348 = vmul.f32 %v340, %v346
    %v349 = vmul.f32 %v341, %v346
    %350 = vadd.xlane.f32.xlu0 %v348
    %v351 = vpop.xlane.xlu0 %350
    %352 = vadd.xlane.f32.xlu0 %v349
    %v353 = vpop.xlane.xlu0 %352
    %v354 = vstv %s168
    %v355 = vadd.f32 %v351, %v354
    %v356 = vadd.f32 %v353, %v354
    %v357 = vmul.f32 %v355, 1.442695
    %v358 = vpow.pop %v357
    %v359 = vmul.f32 %v356, 1.442695
    %v360 = vpow.pop %v359
    %v361 = vld [vmem:[#allocation6] sm:$0xff]
    %v362 = vld [vmem:[#allocation6 + $0x8] sm:$0xff]
    %v363 = vld [vmem:[#allocation6 + $0x10] sm:$0xff]
    %v364 = vld [vmem:[#allocation6 + $0x18] sm:$0xff]
    %v365 = vld [vmem:[#allocation6 + $0x20] sm:$0xff]
    %v366 = vld [vmem:[#allocation6 + $0x28] sm:$0xff]
    %v367 = vld [vmem:[#allocation6 + $0x30] sm:$0xff]
    %v368 = vld [vmem:[#allocation6 + $0x38] sm:$0xff]
    %v370 = vsel %vm183, %v364, 0
    %v373 = vsel %vm183, %v368, 0
    %375 = vmatprep.subr.mxu0 0.0
    %376 = vmatpush1.msra.mxu0 %v116
    %377 = vmatprep.subr.mxu0 0.0
    %378 = vmatpush1.msra.mxu0 %v117
    %379 = vmatprep.subr.mxu0 0.0
    %380 = vmatpush1.msra.mxu0 %v118
    %381 = vmatprep.subr.mxu0 0.0
    %382 = vmatpush1.msra.mxu0 %v119
    %383 = vmatprep.subr.mxu0 0.0
    %384 = vmatpush1.msra.mxu0 %v120
    %385 = vmatprep.subr.mxu0 0.0
    %386 = vmatpush1.msra.mxu0 %v121
    %387 = vmatprep.subr.mxu0 0.0
    %388 = vmatpush1.msra.mxu0 %v122
    %389 = vmatprep.subr.mxu0 0.0
    %390 = vmatpush1.msra.mxu0 %v123
    %391 = vmatprep.subr.mxu0 0.0
    %392 = vmatpush1.msra.mxu0 %v124
    %393 = vmatprep.subr.mxu0 0.0
    %394 = vmatpush1.msra.mxu0 %v125
    %395 = vmatprep.subr.mxu0 0.0
    %396 = vmatpush1.msra.mxu0 %v126
    %397 = vmatprep.subr.mxu0 0.0
    %398 = vmatpush1.msra.mxu0 %v127
    %399 = vmatprep.subr.mxu0 0.0
    %400 = vmatpush1.msra.mxu0 %v128
    %401 = vmatprep.subr.mxu0 0.0
    %402 = vmatpush1.msra.mxu0 %v129
    %403 = vmatprep.subr.mxu0 0.0
    %404 = vmatpush1.msra.mxu0 %v130
    %405 = vmatprep.subr.mxu0 0.0
    %406 = vmatpush1.msra.mxu0 %v131
    %407 = vmatprep.subr.mxu0 0.0
    %408 = vmatpush1.msra.mxu0 %v132
    %409 = vmatprep.subr.mxu0 0.0
    %410 = vmatpush1.msra.mxu0 %v133
    %411 = vmatprep.subr.mxu0 0.0
    %412 = vmatpush1.msra.mxu0 %v134
    %413 = vmatprep.subr.mxu0 0.0
    %414 = vmatpush1.msra.mxu0 %v135
    %415 = vmatprep.subr.mxu0 0.0
    %416 = vmatpush1.msra.mxu0 %v136
    %417 = vmatprep.subr.mxu0 0.0
    %418 = vmatpush1.msra.mxu0 %v137
    %419 = vmatprep.subr.mxu0 0.0
    %420 = vmatpush1.msra.mxu0 %v138
    %421 = vmatprep.subr.mxu0 0.0
    %422 = vmatpush1.msra.mxu0 %v139
    %423 = vmatprep.subr.mxu0 0.0
    %424 = vmatpush1.msra.mxu0 %v140
    %425 = vmatprep.subr.mxu0 0.0
    %426 = vmatpush1.msra.mxu0 %v141
    %427 = vmatprep.subr.mxu0 0.0
    %428 = vmatpush1.msra.mxu0 %v142
    %429 = vmatprep.subr.mxu0 0.0
    %430 = vmatpush1.msra.mxu0 %v143
    %431 = vmatprep.subr.mxu0 0.0
    %432 = vmatpush1.msra.mxu0 %v144
    %433 = vmatprep.subr.mxu0 0.0
    %434 = vmatpush1.msra.mxu0 %v145
    %435 = vmatprep.subr.mxu0 0.0
    %436 = vmatpush1.msra.mxu0 %v146
    %437 = vmatprep.subr.mxu0 0.0
    %438 = vmatpush1.msra.mxu0 %v147
    %439 = vmatprep.mubr.f32.mxu0 %v362
    %440 = vmatmul.mubr.f32.gmra.mrb[0].mxu0 %v361
    %v441 = vpop.f32.mrb[0].mxu0
    %v442 = vadd.f32 %v181, %v441
    %v443 = vpop.f32.mrb[0].mxu0
    %444 = vmatprep.mubr.f32.mxu0 %v366
    %445 = vmatmul.mubr.f32.gmra.mrb[0].mxu0 %v365
    %v446 = vpop.f32.mrb[0].mxu0
    %v447 = vadd.f32 %v181, %v446
    %v448 = vpop.f32.mrb[0].mxu0
    %449 = vdwg.mxu0
    %450 = vmatprep.subr.mxu0 0.0
    %451 = vmatpush1.msra.mxu0 %v148
    %452 = vmatprep.subr.mxu0 0.0
    %453 = vmatpush1.msra.mxu0 %v149
    %454 = vmatprep.subr.mxu0 0.0
    %455 = vmatpush1.msra.mxu0 %v150
    %456 = vmatprep.subr.mxu0 0.0
    %457 = vmatpush1.msra.mxu0 %v151
    %458 = vmatprep.subr.mxu0 0.0
    %459 = vmatpush1.msra.mxu0 %v152
    %460 = vmatprep.subr.mxu0 0.0
    %461 = vmatpush1.msra.mxu0 %v153
    %462 = vmatprep.subr.mxu0 0.0
    %463 = vmatpush1.msra.mxu0 %v154
    %464 = vmatprep.subr.mxu0 0.0
    %465 = vmatpush1.msra.mxu0 %v155
    %466 = vmatprep.subr.mxu0 0.0
    %467 = vmatpush1.msra.mxu0 %v156
    %468 = vmatprep.subr.mxu0 0.0
    %469 = vmatpush1.msra.mxu0 %v157
    %470 = vmatprep.subr.mxu0 0.0
    %471 = vmatpush1.msra.mxu0 %v158
    %472 = vmatprep.subr.mxu0 0.0
    %473 = vmatpush1.msra.mxu0 %v159
    %474 = vmatprep.subr.mxu0 0.0
    %475 = vmatpush1.msra.mxu0 %v160
    %476 = vmatprep.subr.mxu0 0.0
    %477 = vmatpush1.msra.mxu0 %v161
    %478 = vmatprep.subr.mxu0 0.0
    %479 = vmatpush1.msra.mxu0 %v162
    %480 = vmatprep.subr.mxu0 0.0
    %481 = vmatpush1.msra.mxu0 %v163
    %482 = vmatprep.subr.mxu0 0.0
    %483 = vmatpush1.msra.mxu0 %v164
    %484 = vmatprep.subr.mxu0 0.0
    %485 = vmatpush1.msra.mxu0 %v165
    %486 = vmatprep.subr.mxu0 0.0
    %487 = vmatpush1.msra.mxu0 0.0
    %488 = vmatprep.subr.mxu0 0.0
    %489 = vmatpush1.msra.mxu0 0.0
    %490 = vmatprep.subr.mxu0 0.0
    %491 = vmatpush1.msra.mxu0 0.0
    %492 = vmatprep.subr.mxu0 0.0
    %493 = vmatpush1.msra.mxu0 0.0
    %494 = vmatprep.subr.mxu0 0.0
    %495 = vmatpush1.msra.mxu0 0.0
    %496 = vmatprep.subr.mxu0 0.0
    %497 = vmatpush1.msra.mxu0 0.0
    %498 = vmatprep.subr.mxu0 0.0
    %499 = vmatpush1.msra.mxu0 0.0
    %500 = vmatprep.subr.mxu0 0.0
    %501 = vmatpush1.msra.mxu0 0.0
    %502 = vmatprep.subr.mxu0 0.0
    %503 = vmatpush1.msra.mxu0 0.0
    %504 = vmatprep.subr.mxu0 0.0
    %505 = vmatpush1.msra.mxu0 0.0
    %506 = vmatprep.subr.mxu0 0.0
    %507 = vmatpush1.msra.mxu0 0.0
    %508 = vmatprep.subr.mxu0 0.0
    %509 = vmatpush1.msra.mxu0 0.0
    %510 = vmatprep.subr.mxu0 0.0
    %511 = vmatpush1.msra.mxu0 0.0
    %512 = vmatprep.subr.mxu0 0.0
    %513 = vmatpush1.msra.mxu0 0.0
    %514 = vmatprep.mubr.f32.mxu0 %v370
    %515 = vmatmul.mubr.f32.gmra.mrb[0].mxu0 %v363
    %v516 = vpop.f32.mrb[0].mxu0
    %v517 = vadd.f32 %v442, %v516
    %v518 = vpop.f32.mrb[0].mxu0
    %519 = vmatprep.mubr.f32.mxu0 %v373
    %520 = vmatmul.mubr.f32.gmra.mrb[0].mxu0 %v367
    %v521 = vpop.f32.mrb[0].mxu0
    %v522 = vadd.f32 %v447, %v521
    %v523 = vpop.f32.mrb[0].mxu0
    %524 = vdwg.mxu0
    %v525 = vtanh.pop %v517
    %v526 = vtanh.pop %v522
    %v527 = vmul.f32 %v525, %v346
    %v528 = vmul.f32 %v526, %v346
    %529 = vadd.xlane.f32.xlu0 %v527
    %v530 = vpop.xlane.xlu0 %529
    %531 = vadd.xlane.f32.xlu0 %v528
    %v532 = vpop.xlane.xlu0 %531
    %v533 = vadd.f32 %v530, %v354
    %v534 = vadd.f32 %v532, %v354
    %v535 = vmul.f32 %v533, 1.442695
    %v536 = vpow.pop %v535
    %v537 = vmul.f32 %v534, 1.442695
    %v538 = vpow.pop %v537
    %v539 = vld [vmem:[#allocation8] sm:$0xff]
    %v540 = vld [vmem:[#allocation8 + $0x8] sm:$0xff]
    %v541 = vld [vmem:[#allocation8 + $0x10] sm:$0xff]
    %v542 = vld [vmem:[#allocation8 + $0x18] sm:$0xff]
    %v543 = vld [vmem:[#allocation8 + $0x20] sm:$0xff]
    %v544 = vld [vmem:[#allocation8 + $0x28] sm:$0xff]
    %v545 = vld [vmem:[#allocation8 + $0x30] sm:$0xff]
    %v546 = vld [vmem:[#allocation8 + $0x38] sm:$0xff]
    %v548 = vsel %vm183, %v542, 0
    %v551 = vsel %vm183, %v546, 0
    %553 = vmatprep.subr.mxu0 0.0
    %554 = vmatpush1.msra.mxu0 %v116
    %555 = vmatprep.subr.mxu0 0.0
    %556 = vmatpush1.msra.mxu0 %v117
    %557 = vmatprep.subr.mxu0 0.0
    %558 = vmatpush1.msra.mxu0 %v118
    %559 = vmatprep.subr.mxu0 0.0
    %560 = vmatpush1.msra.mxu0 %v119
    %561 = vmatprep.subr.mxu0 0.0
    %562 = vmatpush1.msra.mxu0 %v120
    %563 = vmatprep.subr.mxu0 0.0
    %564 = vmatpush1.msra.mxu0 %v121
    %565 = vmatprep.subr.mxu0 0.0
    %566 = vmatpush1.msra.mxu0 %v122
    %567 = vmatprep.subr.mxu0 0.0
    %568 = vmatpush1.msra.mxu0 %v123
    %569 = vmatprep.subr.mxu0 0.0
    %570 = vmatpush1.msra.mxu0 %v124
    %571 = vmatprep.subr.mxu0 0.0
    %572 = vmatpush1.msra.mxu0 %v125
    %573 = vmatprep.subr.mxu0 0.0
    %574 = vmatpush1.msra.mxu0 %v126
    %575 = vmatprep.subr.mxu0 0.0
    %576 = vmatpush1.msra.mxu0 %v127
    %577 = vmatprep.subr.mxu0 0.0
    %578 = vmatpush1.msra.mxu0 %v128
    %579 = vmatprep.subr.mxu0 0.0
    %580 = vmatpush1.msra.mxu0 %v129
    %581 = vmatprep.subr.mxu0 0.0
    %582 = vmatpush1.msra.mxu0 %v130
    %583 = vmatprep.subr.mxu0 0.0
    %584 = vmatpush1.msra.mxu0 %v131
    %585 = vmatprep.subr.mxu0 0.0
    %586 = vmatpush1.msra.mxu0 %v132
    %587 = vmatprep.subr.mxu0 0.0
    %588 = vmatpush1.msra.mxu0 %v133
    %589 = vmatprep.subr.mxu0 0.0
    %590 = vmatpush1.msra.mxu0 %v134
    %591 = vmatprep.subr.mxu0 0.0
    %592 = vmatpush1.msra.mxu0 %v135
    %593 = vmatprep.subr.mxu0 0.0
    %594 = vmatpush1.msra.mxu0 %v136
    %595 = vmatprep.subr.mxu0 0.0
    %596 = vmatpush1.msra.mxu0 %v137
    %597 = vmatprep.subr.mxu0 0.0
    %598 = vmatpush1.msra.mxu0 %v138
    %599 = vmatprep.subr.mxu0 0.0
    %600 = vmatpush1.msra.mxu0 %v139
    %601 = vmatprep.subr.mxu0 0.0
    %602 = vmatpush1.msra.mxu0 %v140
    %603 = vmatprep.subr.mxu0 0.0
    %604 = vmatpush1.msra.mxu0 %v141
    %605 = vmatprep.subr.mxu0 0.0
    %606 = vmatpush1.msra.mxu0 %v142
    %607 = vmatprep.subr.mxu0 0.0
    %608 = vmatpush1.msra.mxu0 %v143
    %609 = vmatprep.subr.mxu0 0.0
    %610 = vmatpush1.msra.mxu0 %v144
    %611 = vmatprep.subr.mxu0 0.0
    %612 = vmatpush1.msra.mxu0 %v145
    %613 = vmatprep.subr.mxu0 0.0
    %614 = vmatpush1.msra.mxu0 %v146
    %615 = vmatprep.subr.mxu0 0.0
    %616 = vmatpush1.msra.mxu0 %v147
    %617 = vmatprep.mubr.f32.mxu0 %v540
    %618 = vmatmul.mubr.f32.gmra.mrb[0].mxu0 %v539
    %v619 = vpop.f32.mrb[0].mxu0
    %v620 = vadd.f32 %v181, %v619
    %v621 = vpop.f32.mrb[0].mxu0
    %622 = vmatprep.mubr.f32.mxu0 %v544
    %623 = vmatmul.mubr.f32.gmra.mrb[0].mxu0 %v543
    %v624 = vpop.f32.mrb[0].mxu0
    %v625 = vadd.f32 %v181, %v624
    %v626 = vpop.f32.mrb[0].mxu0
    %627 = vdwg.mxu0
    %628 = vmatprep.subr.mxu0 0.0
    %629 = vmatpush1.msra.mxu0 %v148
    %630 = vmatprep.subr.mxu0 0.0
    %631 = vmatpush1.msra.mxu0 %v149
    %632 = vmatprep.subr.mxu0 0.0
    %633 = vmatpush1.msra.mxu0 %v150
    %634 = vmatprep.subr.mxu0 0.0
    %635 = vmatpush1.msra.mxu0 %v151
    %636 = vmatprep.subr.mxu0 0.0
    %637 = vmatpush1.msra.mxu0 %v152
    %638 = vmatprep.subr.mxu0 0.0
    %639 = vmatpush1.msra.mxu0 %v153
    %640 = vmatprep.subr.mxu0 0.0
    %641 = vmatpush1.msra.mxu0 %v154
    %642 = vmatprep.subr.mxu0 0.0
    %643 = vmatpush1.msra.mxu0 %v155
    %644 = vmatprep.subr.mxu0 0.0
    %645 = vmatpush1.msra.mxu0 %v156
    %646 = vmatprep.subr.mxu0 0.0
    %647 = vmatpush1.msra.mxu0 %v157
    %648 = vmatprep.subr.mxu0 0.0
    %649 = vmatpush1.msra.mxu0 %v158
    %650 = vmatprep.subr.mxu0 0.0
    %651 = vmatpush1.msra.mxu0 %v159
    %652 = vmatprep.subr.mxu0 0.0
    %653 = vmatpush1.msra.mxu0 %v160
    %654 = vmatprep.subr.mxu0 0.0
    %655 = vmatpush1.msra.mxu0 %v161
    %656 = vmatprep.subr.mxu0 0.0
    %657 = vmatpush1.msra.mxu0 %v162
    %658 = vmatprep.subr.mxu0 0.0
    %659 = vmatpush1.msra.mxu0 %v163
    %660 = vmatprep.subr.mxu0 0.0
    %661 = vmatpush1.msra.mxu0 %v164
    %662 = vmatprep.subr.mxu0 0.0
    %663 = vmatpush1.msra.mxu0 %v165
    %664 = vmatprep.subr.mxu0 0.0
    %665 = vmatpush1.msra.mxu0 0.0
    %666 = vmatprep.subr.mxu0 0.0
    %667 = vmatpush1.msra.mxu0 0.0
    %668 = vmatprep.subr.mxu0 0.0
    %669 = vmatpush1.msra.mxu0 0.0
    %670 = vmatprep.subr.mxu0 0.0
    %671 = vmatpush1.msra.mxu0 0.0
    %672 = vmatprep.subr.mxu0 0.0
    %673 = vmatpush1.msra.mxu0 0.0
    %674 = vmatprep.subr.mxu0 0.0
    %675 = vmatpush1.msra.mxu0 0.0
    %676 = vmatprep.subr.mxu0 0.0
    %677 = vmatpush1.msra.mxu0 0.0
    %678 = vmatprep.subr.mxu0 0.0
    %679 = vmatpush1.msra.mxu0 0.0
    %680 = vmatprep.subr.mxu0 0.0
    %681 = vmatpush1.msra.mxu0 0.0
    %682 = vmatprep.subr.mxu0 0.0
    %683 = vmatpush1.msra.mxu0 0.0
    %684 = vmatprep.subr.mxu0 0.0
    %685 = vmatpush1.msra.mxu0 0.0
    %686 = vmatprep.subr.mxu0 0.0
    %687 = vmatpush1.msra.mxu0 0.0
    %688 = vmatprep.subr.mxu0 0.0
    %689 = vmatpush1.msra.mxu0 0.0
    %690 = vmatprep.subr.mxu0 0.0
    %691 = vmatpush1.msra.mxu0 0.0
    %692 = vmatprep.mubr.f32.mxu0 %v548
    %693 = vmatmul.mubr.f32.gmra.mrb[0].mxu0 %v541
    %v694 = vpop.f32.mrb[0].mxu0
    %v695 = vadd.f32 %v620, %v694
    %v696 = vpop.f32.mrb[0].mxu0
    %697 = vmatprep.mubr.f32.mxu0 %v551
    %698 = vmatmul.mubr.f32.gmra.mrb[0].mxu0 %v545
    %v699 = vpop.f32.mrb[0].mxu0
    %v700 = vadd.f32 %v625, %v699
    %v701 = vpop.f32.mrb[0].mxu0
    %702 = vdwg.mxu0
    %v703 = vtanh.pop %v695
    %v704 = vtanh.pop %v700
    %v705 = vmul.f32 %v703, %v346
    %v706 = vmul.f32 %v704, %v346
    %707 = vadd.xlane.f32.xlu0 %v705
    %v708 = vpop.xlane.xlu0 %707
    %709 = vadd.xlane.f32.xlu0 %v706
    %v710 = vpop.xlane.xlu0 %709
    %v711 = vadd.f32 %v708, %v354
    %v712 = vadd.f32 %v710, %v354
    %v713 = vmul.f32 %v711, 1.442695
    %v714 = vpow.pop %v713
    %v715 = vmul.f32 %v712, 1.442695
    %v716 = vpow.pop %v715
    %v717 = vld [vmem:[#allocation9] sm:$0xff]
    %v718 = vld [vmem:[#allocation9 + $0x8] sm:$0xff]
    %v719 = vld [vmem:[#allocation9 + $0x10] sm:$0xff]
    %v720 = vld [vmem:[#allocation9 + $0x18] sm:$0xff]
    %v721 = vld [vmem:[#allocation9 + $0x20] sm:$0xff]
    %v722 = vld [vmem:[#allocation9 + $0x28] sm:$0xff]
    %v723 = vld [vmem:[#allocation9 + $0x30] sm:$0xff]
    %v724 = vld [vmem:[#allocation9 + $0x38] sm:$0xff]
    %v726 = vsel %vm183, %v720, 0
    %v729 = vsel %vm183, %v724, 0
    %731 = vmatprep.subr.mxu0 0.0
    %732 = vmatpush1.msra.mxu0 %v116
    %733 = vmatprep.subr.mxu0 0.0
    %734 = vmatpush1.msra.mxu0 %v117
    %735 = vmatprep.subr.mxu0 0.0
    %736 = vmatpush1.msra.mxu0 %v118
    %737 = vmatprep.subr.mxu0 0.0
    %738 = vmatpush1.msra.mxu0 %v119
    %739 = vmatprep.subr.mxu0 0.0
    %740 = vmatpush1.msra.mxu0 %v120
    %741 = vmatprep.subr.mxu0 0.0
    %742 = vmatpush1.msra.mxu0 %v121
    %743 = vmatprep.subr.mxu0 0.0
    %744 = vmatpush1.msra.mxu0 %v122
    %745 = vmatprep.subr.mxu0 0.0
    %746 = vmatpush1.msra.mxu0 %v123
    %747 = vmatprep.subr.mxu0 0.0
    %748 = vmatpush1.msra.mxu0 %v124
    %749 = vmatprep.subr.mxu0 0.0
    %750 = vmatpush1.msra.mxu0 %v125
    %751 = vmatprep.subr.mxu0 0.0
    %752 = vmatpush1.msra.mxu0 %v126
    %753 = vmatprep.subr.mxu0 0.0
    %754 = vmatpush1.msra.mxu0 %v127
    %755 = vmatprep.subr.mxu0 0.0
    %756 = vmatpush1.msra.mxu0 %v128
    %757 = vmatprep.subr.mxu0 0.0
    %758 = vmatpush1.msra.mxu0 %v129
    %759 = vmatprep.subr.mxu0 0.0
    %760 = vmatpush1.msra.mxu0 %v130
    %761 = vmatprep.subr.mxu0 0.0
    %762 = vmatpush1.msra.mxu0 %v131
    %763 = vmatprep.subr.mxu0 0.0
    %764 = vmatpush1.msra.mxu0 %v132
    %765 = vmatprep.subr.mxu0 0.0
    %766 = vmatpush1.msra.mxu0 %v133
    %767 = vmatprep.subr.mxu0 0.0
    %768 = vmatpush1.msra.mxu0 %v134
    %769 = vmatprep.subr.mxu0 0.0
    %770 = vmatpush1.msra.mxu0 %v135
    %771 = vmatprep.subr.mxu0 0.0
    %772 = vmatpush1.msra.mxu0 %v136
    %773 = vmatprep.subr.mxu0 0.0
    %774 = vmatpush1.msra.mxu0 %v137
    %775 = vmatprep.subr.mxu0 0.0
    %776 = vmatpush1.msra.mxu0 %v138
    %777 = vmatprep.subr.mxu0 0.0
    %778 = vmatpush1.msra.mxu0 %v139
    %779 = vmatprep.subr.mxu0 0.0
    %780 = vmatpush1.msra.mxu0 %v140
    %781 = vmatprep.subr.mxu0 0.0
    %782 = vmatpush1.msra.mxu0 %v141
    %783 = vmatprep.subr.mxu0 0.0
    %784 = vmatpush1.msra.mxu0 %v142
    %785 = vmatprep.subr.mxu0 0.0
    %786 = vmatpush1.msra.mxu0 %v143
    %787 = vmatprep.subr.mxu0 0.0
    %788 = vmatpush1.msra.mxu0 %v144
    %789 = vmatprep.subr.mxu0 0.0
    %790 = vmatpush1.msra.mxu0 %v145
    %791 = vmatprep.subr.mxu0 0.0
    %792 = vmatpush1.msra.mxu0 %v146
    %793 = vmatprep.subr.mxu0 0.0
    %794 = vmatpush1.msra.mxu0 %v147
    %795 = vmatprep.mubr.f32.mxu0 %v718
    %796 = vmatmul.mubr.f32.gmra.mrb[0].mxu0 %v717
    %v797 = vpop.f32.mrb[0].mxu0
    %v798 = vadd.f32 %v181, %v797
    %v799 = vpop.f32.mrb[0].mxu0
    %800 = vmatprep.mubr.f32.mxu0 %v722
    %801 = vmatmul.mubr.f32.gmra.mrb[0].mxu0 %v721
    %v802 = vpop.f32.mrb[0].mxu0
    %v803 = vadd.f32 %v181, %v802
    %v804 = vpop.f32.mrb[0].mxu0
    %805 = vdwg.mxu0
    %806 = vmatprep.subr.mxu0 0.0
    %807 = vmatpush1.msra.mxu0 %v148
    %808 = vmatprep.subr.mxu0 0.0
    %809 = vmatpush1.msra.mxu0 %v149
    %810 = vmatprep.subr.mxu0 0.0
    %811 = vmatpush1.msra.mxu0 %v150
    %812 = vmatprep.subr.mxu0 0.0
    %813 = vmatpush1.msra.mxu0 %v151
    %814 = vmatprep.subr.mxu0 0.0
    %815 = vmatpush1.msra.mxu0 %v152
    %816 = vmatprep.subr.mxu0 0.0
    %817 = vmatpush1.msra.mxu0 %v153
    %818 = vmatprep.subr.mxu0 0.0
    %819 = vmatpush1.msra.mxu0 %v154
    %820 = vmatprep.subr.mxu0 0.0
    %821 = vmatpush1.msra.mxu0 %v155
    %822 = vmatprep.subr.mxu0 0.0
    %823 = vmatpush1.msra.mxu0 %v156
    %824 = vmatprep.subr.mxu0 0.0
    %825 = vmatpush1.msra.mxu0 %v157
    %826 = vmatprep.subr.mxu0 0.0
    %827 = vmatpush1.msra.mxu0 %v158
    %828 = vmatprep.subr.mxu0 0.0
    %829 = vmatpush1.msra.mxu0 %v159
    %830 = vmatprep.subr.mxu0 0.0
    %831 = vmatpush1.msra.mxu0 %v160
    %832 = vmatprep.subr.mxu0 0.0
    %833 = vmatpush1.msra.mxu0 %v161
    %834 = vmatprep.subr.mxu0 0.0
    %835 = vmatpush1.msra.mxu0 %v162
    %836 = vmatprep.subr.mxu0 0.0
    %837 = vmatpush1.msra.mxu0 %v163
    %838 = vmatprep.subr.mxu0 0.0
    %839 = vmatpush1.msra.mxu0 %v164
    %840 = vmatprep.subr.mxu0 0.0
    %841 = vmatpush1.msra.mxu0 %v165
    %842 = vmatprep.subr.mxu0 0.0
    %843 = vmatpush1.msra.mxu0 0.0
    %844 = vmatprep.subr.mxu0 0.0
    %845 = vmatpush1.msra.mxu0 0.0
    %846 = vmatprep.subr.mxu0 0.0
    %847 = vmatpush1.msra.mxu0 0.0
    %848 = vmatprep.subr.mxu0 0.0
    %849 = vmatpush1.msra.mxu0 0.0
    %850 = vmatprep.subr.mxu0 0.0
    %851 = vmatpush1.msra.mxu0 0.0
    %852 = vmatprep.subr.mxu0 0.0
    %853 = vmatpush1.msra.mxu0 0.0
    %854 = vmatprep.subr.mxu0 0.0
    %855 = vmatpush1.msra.mxu0 0.0
    %856 = vmatprep.subr.mxu0 0.0
    %857 = vmatpush1.msra.mxu0 0.0
    %858 = vmatprep.subr.mxu0 0.0
    %859 = vmatpush1.msra.mxu0 0.0
    %860 = vmatprep.subr.mxu0 0.0
    %861 = vmatpush1.msra.mxu0 0.0
    %862 = vmatprep.subr.mxu0 0.0
    %863 = vmatpush1.msra.mxu0 0.0
    %864 = vmatprep.subr.mxu0 0.0
    %865 = vmatpush1.msra.mxu0 0.0
    %866 = vmatprep.subr.mxu0 0.0
    %867 = vmatpush1.msra.mxu0 0.0
    %868 = vmatprep.subr.mxu0 0.0
    %869 = vmatpush1.msra.mxu0 0.0
    %870 = vmatprep.mubr.f32.mxu0 %v726
    %871 = vmatmul.mubr.f32.gmra.mrb[0].mxu0 %v719
    %v872 = vpop.f32.mrb[0].mxu0
    %v873 = vadd.f32 %v798, %v872
    %v874 = vpop.f32.mrb[0].mxu0
    %875 = vmatprep.mubr.f32.mxu0 %v729
    %876 = vmatmul.mubr.f32.gmra.mrb[0].mxu0 %v723
    %v877 = vpop.f32.mrb[0].mxu0
    %v878 = vadd.f32 %v803, %v877
    %v879 = vpop.f32.mrb[0].mxu0
    %880 = vdwg.mxu0
    %v881 = vtanh.pop %v873
    %v882 = vtanh.pop %v878
    %v883 = vmul.f32 %v881, %v346
    %v884 = vmul.f32 %v882, %v346
    %885 = vadd.xlane.f32.xlu0 %v883
    %v886 = vpop.xlane.xlu0 %885
    %887 = vadd.xlane.f32.xlu0 %v884
    %v888 = vpop.xlane.xlu0 %887
    %v889 = vadd.f32 %v886, %v354
    %v890 = vadd.f32 %v888, %v354
    %v891 = vmul.f32 %v889, 1.442695
    %v892 = vpow.pop %v891
    %v893 = vmul.f32 %v890, 1.442695
    %v894 = vpow.pop %v893
    %v895 = vld [vmem:[#allocation11] sm:$0xff]
    %v896 = vld [vmem:[#allocation11 + $0x8] sm:$0xff]
    %v897 = vld [vmem:[#allocation11 + $0x10] sm:$0xff]
    %v898 = vld [vmem:[#allocation11 + $0x18] sm:$0xff]
    %v899 = vld [vmem:[#allocation11 + $0x20] sm:$0xff]
    %v900 = vld [vmem:[#allocation11 + $0x28] sm:$0xff]
    %v901 = vld [vmem:[#allocation11 + $0x30] sm:$0xff]
    %v902 = vld [vmem:[#allocation11 + $0x38] sm:$0xff]
    %v904 = vsel %vm183, %v898, 0
    %v907 = vsel %vm183, %v902, 0
    %909 = vmatprep.subr.mxu0 0.0
    %910 = vmatpush1.msra.mxu0 %v116
    %911 = vmatprep.subr.mxu0 0.0
    %912 = vmatpush1.msra.mxu0 %v117
    %913 = vmatprep.subr.mxu0 0.0
    %914 = vmatpush1.msra.mxu0 %v118
    %915 = vmatprep.subr.mxu0 0.0
    %916 = vmatpush1.msra.mxu0 %v119
    %917 = vmatprep.subr.mxu0 0.0
    %918 = vmatpush1.msra.mxu0 %v120
    %919 = vmatprep.subr.mxu0 0.0
    %920 = vmatpush1.msra.mxu0 %v121
    %921 = vmatprep.subr.mxu0 0.0
    %922 = vmatpush1.msra.mxu0 %v122
    %923 = vmatprep.subr.mxu0 0.0
    %924 = vmatpush1.msra.mxu0 %v123
    %925 = vmatprep.subr.mxu0 0.0
    %926 = vmatpush1.msra.mxu0 %v124
    %927 = vmatprep.subr.mxu0 0.0
    %928 = vmatpush1.msra.mxu0 %v125
    %929 = vmatprep.subr.mxu0 0.0
    %930 = vmatpush1.msra.mxu0 %v126
    %931 = vmatprep.subr.mxu0 0.0
    %932 = vmatpush1.msra.mxu0 %v127
    %933 = vmatprep.subr.mxu0 0.0
    %934 = vmatpush1.msra.mxu0 %v128
    %935 = vmatprep.subr.mxu0 0.0
    %936 = vmatpush1.msra.mxu0 %v129
    %937 = vmatprep.subr.mxu0 0.0
    %938 = vmatpush1.msra.mxu0 %v130
    %939 = vmatprep.subr.mxu0 0.0
    %940 = vmatpush1.msra.mxu0 %v131
    %941 = vmatprep.subr.mxu0 0.0
    %942 = vmatpush1.msra.mxu0 %v132
    %943 = vmatprep.subr.mxu0 0.0
    %944 = vmatpush1.msra.mxu0 %v133
    %945 = vmatprep.subr.mxu0 0.0
    %946 = vmatpush1.msra.mxu0 %v134
    %947 = vmatprep.subr.mxu0 0.0
    %948 = vmatpush1.msra.mxu0 %v135
    %949 = vmatprep.subr.mxu0 0.0
    %950 = vmatpush1.msra.mxu0 %v136
    %951 = vmatprep.subr.mxu0 0.0
    %952 = vmatpush1.msra.mxu0 %v137
    %953 = vmatprep.subr.mxu0 0.0
    %954 = vmatpush1.msra.mxu0 %v138
    %955 = vmatprep.subr.mxu0 0.0
    %956 = vmatpush1.msra.mxu0 %v139
    %957 = vmatprep.subr.mxu0 0.0
    %958 = vmatpush1.msra.mxu0 %v140
    %959 = vmatprep.subr.mxu0 0.0
    %960 = vmatpush1.msra.mxu0 %v141
    %961 = vmatprep.subr.mxu0 0.0
    %962 = vmatpush1.msra.mxu0 %v142
    %963 = vmatprep.subr.mxu0 0.0
    %964 = vmatpush1.msra.mxu0 %v143
    %965 = vmatprep.subr.mxu0 0.0
    %966 = vmatpush1.msra.mxu0 %v144
    %967 = vmatprep.subr.mxu0 0.0
    %968 = vmatpush1.msra.mxu0 %v145
    %969 = vmatprep.subr.mxu0 0.0
    %970 = vmatpush1.msra.mxu0 %v146
    %971 = vmatprep.subr.mxu0 0.0
    %972 = vmatpush1.msra.mxu0 %v147
    %973 = vmatprep.mubr.f32.mxu0 %v896
    %974 = vmatmul.mubr.f32.gmra.mrb[0].mxu0 %v895
    %v975 = vpop.f32.mrb[0].mxu0
    %v976 = vadd.f32 %v181, %v975
    %v977 = vpop.f32.mrb[0].mxu0
    %978 = vmatprep.mubr.f32.mxu0 %v900
    %979 = vmatmul.mubr.f32.gmra.mrb[0].mxu0 %v899
    %v980 = vpop.f32.mrb[0].mxu0
    %v981 = vadd.f32 %v181, %v980
    %v982 = vpop.f32.mrb[0].mxu0
    %983 = vdwg.mxu0
    %984 = vmatprep.subr.mxu0 0.0
    %985 = vmatpush1.msra.mxu0 %v148
    %986 = vmatprep.subr.mxu0 0.0
    %987 = vmatpush1.msra.mxu0 %v149
    %988 = vmatprep.subr.mxu0 0.0
    %989 = vmatpush1.msra.mxu0 %v150
    %990 = vmatprep.subr.mxu0 0.0
    %991 = vmatpush1.msra.mxu0 %v151
    %992 = vmatprep.subr.mxu0 0.0
    %993 = vmatpush1.msra.mxu0 %v152
    %994 = vmatprep.subr.mxu0 0.0
    %995 = vmatpush1.msra.mxu0 %v153
    %996 = vmatprep.subr.mxu0 0.0
    %997 = vmatpush1.msra.mxu0 %v154
    %998 = vmatprep.subr.mxu0 0.0
    %999 = vmatpush1.msra.mxu0 %v155
    %1000 = vmatprep.subr.mxu0 0.0
    %1001 = vmatpush1.msra.mxu0 %v156
    %1002 = vmatprep.subr.mxu0 0.0
    %1003 = vmatpush1.msra.mxu0 %v157
    %1004 = vmatprep.subr.mxu0 0.0
    %1005 = vmatpush1.msra.mxu0 %v158
    %1006 = vmatprep.subr.mxu0 0.0
    %1007 = vmatpush1.msra.mxu0 %v159
    %1008 = vmatprep.subr.mxu0 0.0
    %1009 = vmatpush1.msra.mxu0 %v160
    %1010 = vmatprep.subr.mxu0 0.0
    %1011 = vmatpush1.msra.mxu0 %v161
    %1012 = vmatprep.subr.mxu0 0.0
    %1013 = vmatpush1.msra.mxu0 %v162
    %1014 = vmatprep.subr.mxu0 0.0
    %1015 = vmatpush1.msra.mxu0 %v163
    %1016 = vmatprep.subr.mxu0 0.0
    %1017 = vmatpush1.msra.mxu0 %v164
    %1018 = vmatprep.subr.mxu0 0.0
    %1019 = vmatpush1.msra.mxu0 %v165
    %1020 = vmatprep.subr.mxu0 0.0
    %1021 = vmatpush1.msra.mxu0 0.0
    %1022 = vmatprep.subr.mxu0 0.0
    %1023 = vmatpush1.msra.mxu0 0.0
    %1024 = vmatprep.subr.mxu0 0.0
    %1025 = vmatpush1.msra.mxu0 0.0
    %1026 = vmatprep.subr.mxu0 0.0
    %1027 = vmatpush1.msra.mxu0 0.0
    %1028 = vmatprep.subr.mxu0 0.0
    %1029 = vmatpush1.msra.mxu0 0.0
    %1030 = vmatprep.subr.mxu0 0.0
    %1031 = vmatpush1.msra.mxu0 0.0
    %1032 = vmatprep.subr.mxu0 0.0
    %1033 = vmatpush1.msra.mxu0 0.0
    %1034 = vmatprep.subr.mxu0 0.0
    %1035 = vmatpush1.msra.mxu0 0.0
    %1036 = vmatprep.subr.mxu0 0.0
    %1037 = vmatpush1.msra.mxu0 0.0
    %1038 = vmatprep.subr.mxu0 0.0
    %1039 = vmatpush1.msra.mxu0 0.0
    %1040 = vmatprep.subr.mxu0 0.0
    %1041 = vmatpush1.msra.mxu0 0.0
    %1042 = vmatprep.subr.mxu0 0.0
    %1043 = vmatpush1.msra.mxu0 0.0
    %1044 = vmatprep.subr.mxu0 0.0
    %1045 = vmatpush1.msra.mxu0 0.0
    %1046 = vmatprep.subr.mxu0 0.0
    %1047 = vmatpush1.msra.mxu0 0.0
    %1048 = vmatprep.mubr.f32.mxu0 %v904
    %1049 = vmatmul.mubr.f32.gmra.mrb[0].mxu0 %v897
    %v1050 = vpop.f32.mrb[0].mxu0
    %v1051 = vadd.f32 %v976, %v1050
    %v1052 = vpop.f32.mrb[0].mxu0
    %1053 = vmatprep.mubr.f32.mxu0 %v907
    %1054 = vmatmul.mubr.f32.gmra.mrb[0].mxu0 %v901
    %v1055 = vpop.f32.mrb[0].mxu0
    %v1056 = vadd.f32 %v981, %v1055
    %v1057 = vpop.f32.mrb[0].mxu0
    %1058 = vdwg.mxu0
    %v1059 = vtanh.pop %v1051
    %v1060 = vtanh.pop %v1056
    %v1061 = vmul.f32 %v1059, %v346
    %v1062 = vmul.f32 %v1060, %v346
    %1063 = vadd.xlane.f32.xlu0 %v1061
    %v1064 = vpop.xlane.xlu0 %1063
    %1065 = vadd.xlane.f32.xlu0 %v1062
    %v1066 = vpop.xlane.xlu0 %1065
    %v1067 = vadd.f32 %v1064, %v354
    %v1068 = vadd.f32 %v1066, %v354
    %v1069 = vmul.f32 %v1067, 1.442695
    %v1070 = vpow.pop %v1069
    %v1071 = vmul.f32 %v1068, 1.442695
    %v1072 = vpow.pop %v1071
    %v1073 = vadd.f32 %v358, %v536
    %v1074 = vadd.f32 %v360, %v538
    %v1075 = vadd.f32 %v1073, %v714
    %v1076 = vadd.f32 %v1074, %v716
    %v1077 = vadd.f32 %v1075, %v892
    %v1078 = vadd.f32 %v1076, %v894
    %v1079 = vadd.f32 %v1077, %v1070
    %v1080 = vadd.f32 %v1078, %v1072
    %v1081 = vadd.f32 %v1079, 1e-08
    %v1082 = vadd.f32 %v1080, 1e-08
    %v1083 = vrcp.pop %v1081
    %v1084 = vrcp.pop %v1082
    %v1085 = vmul.f32 %v358, %v1083
    %v1086 = vmul.f32 %v360, %v1084
    %v1087 = vmul.f32 %v169, %v1085
    %v1088 = vmul.f32 %v170, %v1085
    %v1089 = vmul.f32 %v171, %v1085
    %v1090 = vmul.f32 %v172, %v1085
    %v1091 = vmul.f32 %v173, %v1086
    %v1092 = vmul.f32 %v174, %v1086
    %v1093 = vmul.f32 %v175, %v1086
    %v1094 = vmul.f32 %v176, %v1086
    %v1095 = vmul.f32 %v536, %v1083
    %v1096 = vmul.f32 %v538, %v1084
    %v1097 = vmul.f32 %v361, %v1095
    %v1098 = vmul.f32 %v362, %v1095
    %v1099 = vmul.f32 %v363, %v1095
    %v1100 = vmul.f32 %v364, %v1095
    %v1101 = vmul.f32 %v365, %v1096
    %v1102 = vmul.f32 %v366, %v1096
    %v1103 = vmul.f32 %v367, %v1096
    %v1104 = vmul.f32 %v368, %v1096
    %v1105 = vadd.f32 %v1087, %v1097
    %v1106 = vadd.f32 %v1088, %v1098
    %v1107 = vadd.f32 %v1089, %v1099
    %v1108 = vadd.f32 %v1090, %v1100
    %v1109 = vadd.f32 %v1091, %v1101
    %v1110 = vadd.f32 %v1092, %v1102
    %v1111 = vadd.f32 %v1093, %v1103
    %v1112 = vadd.f32 %v1094, %v1104
    %v1113 = vmul.f32 %v714, %v1083
    %v1114 = vmul.f32 %v716, %v1084
    %v1115 = vmul.f32 %v539, %v1113
    %v1116 = vmul.f32 %v540, %v1113
    %v1117 = vmul.f32 %v541, %v1113
    %v1118 = vmul.f32 %v542, %v1113
    %v1119 = vmul.f32 %v543, %v1114
    %v1120 = vmul.f32 %v544, %v1114
    %v1121 = vmul.f32 %v545, %v1114
    %v1122 = vmul.f32 %v546, %v1114
    %v1123 = vadd.f32 %v1105, %v1115
    %v1124 = vadd.f32 %v1106, %v1116
    %v1125 = vadd.f32 %v1107, %v1117
    %v1126 = vadd.f32 %v1108, %v1118
    %v1127 = vadd.f32 %v1109, %v1119
    %v1128 = vadd.f32 %v1110, %v1120
    %v1129 = vadd.f32 %v1111, %v1121
    %v1130 = vadd.f32 %v1112, %v1122
    %v1131 = vmul.f32 %v892, %v1083
    %v1132 = vmul.f32 %v894, %v1084
    %v1133 = vmul.f32 %v717, %v1131
    %v1134 = vmul.f32 %v718, %v1131
    %v1135 = vmul.f32 %v719, %v1131
    %v1136 = vmul.f32 %v720, %v1131
    %v1137 = vmul.f32 %v721, %v1132
    %v1138 = vmul.f32 %v722, %v1132
    %v1139 = vmul.f32 %v723, %v1132
    %v1140 = vmul.f32 %v724, %v1132
    %v1141 = vadd.f32 %v1123, %v1133
    %v1142 = vadd.f32 %v1124, %v1134
    %v1143 = vadd.f32 %v1125, %v1135
    %v1144 = vadd.f32 %v1126, %v1136
    %v1145 = vadd.f32 %v1127, %v1137
    %v1146 = vadd.f32 %v1128, %v1138
    %v1147 = vadd.f32 %v1129, %v1139
    %v1148 = vadd.f32 %v1130, %v1140
    %v1149 = vmul.f32 %v1070, %v1083
    %v1150 = vmul.f32 %v1072, %v1084
    %v1151 = vmul.f32 %v895, %v1149
    %v1152 = vmul.f32 %v896, %v1149
    %v1153 = vmul.f32 %v897, %v1149
    %v1154 = vmul.f32 %v898, %v1149
    %v1155 = vmul.f32 %v899, %v1150
    %v1156 = vmul.f32 %v900, %v1150
    %v1157 = vmul.f32 %v901, %v1150
    %v1158 = vmul.f32 %v902, %v1150
    %v1159 = vadd.f32 %v1141, %v1151
    %v1160 = vadd.f32 %v1142, %v1152
    %v1161 = vadd.f32 %v1143, %v1153
    %v1162 = vadd.f32 %v1144, %v1154
    %v1163 = vadd.f32 %v1145, %v1155
    %v1164 = vadd.f32 %v1146, %v1156
    %v1165 = vadd.f32 %v1147, %v1157
    %v1166 = vadd.f32 %v1148, %v1158
    %1167 = vst [vmem:[#allocation14] sm:$0xff] %v1159
    %1168 = vst [vmem:[#allocation14 + $0x8] sm:$0xff] %v1160
    %1169 = vst [vmem:[#allocation14 + $0x10] sm:$0xff] %v1161
    %1170 = vst.msk [vmem:[#allocation14 + $0x18] sm:$0xff] %vm183, %v1162
    %1171 = vst [vmem:[#allocation14 + $0x20] sm:$0xff] %v1163
    %1172 = vst [vmem:[#allocation14 + $0x28] sm:$0xff] %v1164
    %1173 = vst [vmem:[#allocation14 + $0x30] sm:$0xff] %v1165
    %1174 = vst.msk [vmem:[#allocation14 + $0x38] sm:$0xff] %vm183, %v1166
    // Predicated region
    $region62: #{tpu_custom_call.1} parent=1 // pred_check
      _
    $region63: #{tpu_custom_call.1} parent=1 // pred_check_branch
      %1176 = sbr.rel (0) target = $region65
    $region64: #{tpu_custom_call.1} parent=1 // pred_region
      %s1178 = ssub.s32 1024, 1024
      %1179 = vsyncadd [#allocation5], %s1178
      %s1180 = sshll.u32 [#allocation14], 4
      %s1181 = int_to_ptr.vmem [resolvable:$true] %s1180
      %1186 = dma.vmem_to_hbm [thread:$0]  %s1181, 1024, %s9, [#allocation5], 512, 512, 32
    $region65: #{tpu_custom_call.1} parent=1 // pred_fallthru
      _
    // Predicated region
    $region66: #{tpu_custom_call.1} parent=1 // pred_check
      _
    $region67: #{tpu_custom_call.1} parent=1 // pred_check_branch
      %1188 = sbr.rel (0) target = $region69
    $region68: #{tpu_custom_call.1} parent=1 // pred_region
      %1189 = dma.done [#allocation5], 1024
    $region69: #{tpu_custom_call.1} parent=1 // pred_fallthru
      _
    %1190 = vsyncpa [#allocation4], 1
    %1191 = vsyncpa [#allocation7], 1
    %1192 = vsyncpa [#allocation10], 1
    %1193 = vsyncpa [#allocation13], 1
    %1194 = vsyncpa [#allocation5], 1

</llo_original>
